<compile_context>
chip_gen: v7x
topology: tpu7x:2x2x1
jax: 0.10.0
libtpu: 0.0.40
codegen_flags: <defaults>
</compile_context>

<pallas_src>
import functools

import numpy as np
import jax
import jax.numpy as jnp
from jax.experimental import pallas as pl
from jax.experimental.pallas import tpu as pltpu


# --------------------------------------------------------------------------- #
# Kernel
# --------------------------------------------------------------------------- #
def _bottleneck1_kernel(
    mask_ref,                            # (2, Nt) f32: row0 zeroes pos==0, row1 zeroes pos==L-1
    x_ref,                               # (Cin, Nt) bf16 or f32 activations
    w1_ref, b1_ref,                      # (Wp, Cin) bf16 , (Wp, 1) f32   (BN1 folded)
    w2a_ref, w2b_ref, w2c_ref, b2_ref,   # 3 x (Wp, Wp) bf16 taps, (Wp, 1) f32 (BN2 folded)
    w3_ref, b3_ref,                      # (C3p, Wp) bf16 , (C3p, 1) f32  (BN3 folded)
    o_ref,                               # (C3p, Nt)
    *, lanes_aligned,
):
    nt = x_ref.shape[-1]

    # ---- conv1 (1x1) + bias + ReLU  (BN1 scale pre-folded) ------------------
    xb = x_ref[...].astype(jnp.bfloat16)
    h = jnp.dot(w1_ref[...], xb, preferred_element_type=jnp.float32)
    h = jnp.maximum(h + b1_ref[...], 0.0)                    # (Wp, Nt) f32
    hb = h.astype(jnp.bfloat16)                              # centre-tap operand

    # ---- conv2 (k=3, pad=1): three accumulating tap matmuls -----------------
    # Shifted copies of h; rolls in f32 (portable incl. v5e), lanes that wrap
    # or cross a batch-row boundary are zeroed by the precomputed mask.
    if lanes_aligned:
        sr = pltpu.roll(h, shift=1, axis=1)                  # value from l-1
        sl = pltpu.roll(h, shift=nt - 1, axis=1)             # value from l+1
    else:
        # Single small tile (lanes not a multiple of 128): slice+concat shuffle.
        zcol = jnp.zeros_like(h[:, :1])
        sr = jnp.concatenate([zcol, h[:, :-1]], axis=1)
        sl = jnp.concatenate([h[:, 1:], zcol], axis=1)
    h_lm1 = (sr * mask_ref[0:1, :]).astype(jnp.bfloat16)     # h[l-1], 0 at pos==0
    h_lp1 = (sl * mask_ref[1:2, :]).astype(jnp.bfloat16)     # h[l+1], 0 at pos==L-1

    h2 = jnp.dot(w2a_ref[...], h_lm1, preferred_element_type=jnp.float32)
    h2 = h2 + jnp.dot(w2b_ref[...], hb, preferred_element_type=jnp.float32)
    h2 = h2 + jnp.dot(w2c_ref[...], h_lp1, preferred_element_type=jnp.float32)
    h2 = jnp.maximum(h2 + b2_ref[...], 0.0)                  # (Wp, Nt) f32

    # ---- conv3 (1x1) + bias + ReLU ------------------------------------------
    h3 = jnp.dot(w3_ref[...], h2.astype(jnp.bfloat16),
                 preferred_element_type=jnp.float32)
    o_ref[...] = jnp.maximum(h3 + b3_ref[...], 0.0).astype(o_ref.dtype)


# --------------------------------------------------------------------------- #
# Wrapper helpers
# --------------------------------------------------------------------------- #
_VMEM_LIMIT_BYTES = 32 * 1024 * 1024    # safe on v5e/v6e (128 MiB) and v7x (64 MiB)
_TILE_VMEM_BUDGET = 20 * 1024 * 1024    # target working-set per grid step


def _round_up(v, m):
    return -(-v // m) * m


def _boundary_mask(nt, seq_len, dtype=jnp.float32):
    """(2, nt) mask: row0 zero where pos%L==0 (no l-1), row1 zero where pos%L==L-1."""
    pos = jnp.arange(nt, dtype=jnp.int32) % seq_len
    return jnp.stack([pos != 0, pos != seq_len - 1]).astype(dtype)


def _weight_vmem_bytes(fp):
    # Constant operands are DMA'd once but still allocate two buffers each.
    return sum(2 * v.size * v.dtype.itemsize for v in fp.values())


def _per_lane_bytes(cin, wp, c3p, out_bytes):
    """Rough per-output-lane VMEM footprint (double-buffered I/O + live temps)."""
    io = 2 * cin * 4 + 2 * c3p * out_bytes + 2 * 2 * 4
    live = wp * (4 * 4 + 3 * 2) + c3p * 4   # h/sr/sl/h2 f32 + 3 bf16 copies + h3 f32
    return io + live


def _pick_batch_tile(batch, length, per_lane, budget):
    """Largest divisor bt of batch with 128-aligned bt*length lanes fitting the budget."""
    divisors = [bt for bt in range(1, batch + 1) if batch % bt == 0]
    aligned = [bt for bt in divisors if (bt * length) % 128 == 0]
    if not aligned:
        # No 128-aligned tiling exists: fall back to a single full-extent tile
        # (always legal for BlockSpec; only happens for small / odd B*L).
        return batch
    fitting = [bt for bt in aligned if bt * length * per_lane <= budget]
    return max(fitting) if fitting else min(aligned)


# --------------------------------------------------------------------------- #
# Forward wrapper
# --------------------------------------------------------------------------- #
@functools.partial(jax.jit, static_argnames=("out_dtype",))
def bottleneck1_forward(x, fp, *, out_dtype=None):
    """x: (B, Cin, L) float32; fp: folded/padded params from fold_params().

    Returns (B, C3, L) with C3 = planes * 16 (always a multiple of 8, so no
    output-channel padding is visible).  Pass out_dtype=jnp.bfloat16 to halve
    output HBM traffic if downstream tolerates it."""
    B, Cin, L = x.shape
    out_dtype = x.dtype if out_dtype is None else out_dtype
    out_bytes = np.dtype(out_dtype).itemsize
    Wp = fp["w1"].shape[0]
    C3p = fp["w3"].shape[0]

    consts = (fp["w1"], fp["b1"], fp["w2a"], fp["w2b"], fp["w2c"], fp["b2"],
              fp["w3"], fp["b3"])

    def const_spec(a):
        # Same block index every step -> DMA'd once across the grid.
        # (Single-buffering them via pipeline_mode would additionally halve
        #  their VMEM footprint; left at the default for portability.)
        return pl.BlockSpec(a.shape, lambda *_: (0,) * a.ndim)

    cparams = pltpu.CompilerParams(
        dimension_semantics=("parallel",),
        vmem_limit_bytes=_VMEM_LIMIT_BYTES)

    if L % 128 == 0:
        # Lane-dense per-batch-row path: no wrapper-side transpose / cast passes,
        # kernel reads x[b]=(Cin,L) f32 and writes out[b]=(C3p,L) directly.
        # grid over B also shards across the two TensorCores on v7x when B >= 2.
        mask = _boundary_mask(L, L)
        return pl.pallas_call(
            functools.partial(_bottleneck1_kernel, lanes_aligned=True),
            out_shape=jax.ShapeDtypeStruct((B, C3p, L), out_dtype),
            grid=(B,),
            in_specs=[const_spec(mask),
                      pl.BlockSpec((None, Cin, L), lambda b: (b, 0, 0))]
                     + [const_spec(a) for a in consts],
            out_specs=pl.BlockSpec((None, C3p, L), lambda b: (b, 0, 0)),
            compiler_params=cparams,
        )(mask, x, *consts)
        # NOTE: for very long L the per-row working set (~(Cin+6*Wp+C3p)*L words)
        # can exceed the VMEM budget; tiling L needs a 1-element halo (not done).

    # Fallback path (L not lane-dense): present the batch as one lane-dense
    # (Cin, B*L) slab; tiles contain whole batch rows and are 128-aligned
    # whenever the grid has more than one step.
    n = B * L
    per_lane = _per_lane_bytes(Cin, Wp, C3p, out_bytes)
    budget = max(_TILE_VMEM_BUDGET - _weight_vmem_bytes(fp), 2 * 1024 * 1024)
    bt = _pick_batch_tile(B, L, per_lane, budget)
    n_tiles = B // bt
    nt = bt * L
    mask = _boundary_mask(nt, L)
    x2 = jnp.transpose(x, (1, 0, 2)).reshape(Cin, n).astype(jnp.bfloat16)

    out2 = pl.pallas_call(
        functools.partial(_bottleneck1_kernel, lanes_aligned=(nt % 128 == 0)),
        out_shape=jax.ShapeDtypeStruct((C3p, n), out_dtype),
        grid=(n_tiles,),
        in_specs=[const_spec(mask),
                  pl.BlockSpec((Cin, nt), lambda t: (0, t))]
                 + [const_spec(a) for a in consts],
        out_specs=pl.BlockSpec((C3p, nt), lambda t: (0, t)),
        compiler_params=cparams,
    )(mask, x2, *consts)
    return jnp.transpose(out2.reshape(C3p, B, L), (1, 0, 2))


# --------------------------------------------------------------------------- #
# Parameters (deterministic, inference-mode BatchNorm)
# --------------------------------------------------------------------------- #
def _fold_bn(gamma, beta, mean, var, eps=1e-5):
    scale = gamma / jnp.sqrt(var + eps)
    bias = beta - mean * scale
    return scale[:, None].astype(jnp.float32), bias[:, None].astype(jnp.float32)


def _pad2(a, rows, cols):
    return jnp.pad(a, ((0, rows - a.shape[0]), (0, cols - a.shape[1])))


def make_params(key, inplanes, planes, base_width=64, groups=1, expansion=16):
    """Raw conv weights + BatchNorm1d running stats (matches the torch module)."""
    width = int(planes * (base_width / 64.0)) * groups
    c3 = planes * expansion
    ks = jax.random.split(key, 6)

    def w(k, shape, fan_in):
        return jax.random.normal(k, shape, jnp.float32) / jnp.sqrt(fan_in)

    def bn(k, c):
        k1, k2, k3, k4 = jax.random.split(k, 4)
        gamma = 1.0 + 0.1 * jax.random.normal(k1, (c,), jnp.float32)
        beta = 0.1 * jax.random.normal(k2, (c,), jnp.float32)
        mean = 0.1 * jax.random.normal(k3, (c,), jnp.float32)
        var = jnp.abs(1.0 + 0.1 * jax.random.normal(k4, (c,), jnp.float32))
        return (gamma, beta, mean, var)

    return dict(
        W1=w(ks[0], (width, inplanes), inplanes),       # conv1x1: (W, Cin)
        W2=w(ks[1], (width, width, 3), width * 3),      # conv k=3: (W, W, 3)
        W3=w(ks[2], (c3, width), width),                # conv1x1: (C3, W)
        bn1=bn(ks[3], width), bn2=bn(ks[4], width), bn3=bn(ks[5], c3),
    )


def fold_params(p, *, pad_to=8):
    """Fold BN scales into conv weights, split the k=3 conv into per-tap
    matrices, zero-pad channel dims (W, C3) to multiples of `pad_to` sublanes,
    and cast MXU operands to bf16 (biases stay f32).

    Cin is intentionally NOT padded: the activation tile carries it at full
    extent (legal for BlockSpec) and padding it would add an HBM pass over x.
    C3 = planes * 16 is always a multiple of 8 already, so the padded output
    channel count equals the real one."""
    s1, b1 = _fold_bn(*p["bn1"])
    s2, b2 = _fold_bn(*p["bn2"])
    s3, b3 = _fold_bn(*p["bn3"])

    w1 = s1 * p["W1"]                       # (W, Cin)
    w2 = s2[:, :, None] * p["W2"]           # (W, W, 3)
    w3 = s3 * p["W3"]                       # (C3, W)

    W, Cin = w1.shape
    C3 = w3.shape[0]
    Wp = _round_up(W, pad_to)
    C3p = _round_up(C3, pad_to)

    return dict(
        w1=_pad2(w1, Wp, Cin).astype(jnp.bfloat16),
        w2a=_pad2(w2[:, :, 0], Wp, Wp).astype(jnp.bfloat16),
        w2b=_pad2(w2[:, :, 1], Wp, Wp).astype(jnp.bfloat16),
        w2c=_pad2(w2[:, :, 2], Wp, Wp).astype(jnp.bfloat16),
        w3=_pad2(w3, C3p, Wp).astype(jnp.bfloat16),
        b1=_pad2(b1, Wp, 1), b2=_pad2(b2, Wp, 1), b3=_pad2(b3, C3p, 1),
    )


# --------------------------------------------------------------------------- #
# Pure-JAX references
# --------------------------------------------------------------------------- #
def reference_folded(x, fp):
    """Mirror of the kernel math (bf16 MXU operands, f32 accumulation)."""
    xb = x.astype(jnp.bfloat16)
    h = jnp.einsum("oc,bcl->bol", fp["w1"], xb, preferred_element_type=jnp.float32)
    h = jnp.maximum(h + fp["b1"][None], 0.0)
    hb = h.astype(jnp.bfloat16)
    zero = jnp.zeros_like(hb[:, :, :1])
    h_lm1 = jnp.concatenate([zero, hb[:, :, :-1]], axis=2)
    h_lp1 = jnp.concatenate([hb[:, :, 1:], zero], axis=2)
    h2 = (jnp.einsum("oc,bcl->bol", fp["w2a"], h_lm1, preferred_element_type=jnp.float32)
          + jnp.einsum("oc,bcl->bol", fp["w2b"], hb, preferred_element_type=jnp.float32)
          + jnp.einsum("oc,bcl->bol", fp["w2c"], h_lp1, preferred_element_type=jnp.float32))
    h2 = jnp.maximum(h2 + fp["b2"][None], 0.0)
    h3 = jnp.einsum("oc,bcl->bol", fp["w3"], h2.astype(jnp.bfloat16),
                    preferred_element_type=jnp.float32)
    return jnp.maximum(h3 + fp["b3"][None], 0.0)


def reference_original(x, p, eps=1e-5):
    """Full-precision reference with the original conv -> BN -> ReLU math."""
    def bn(y, stats):
        g, b, m, v = (s[None, :, None] for s in stats)
        return (y - m) / jnp.sqrt(v + eps) * g + b

    h = jnp.maximum(bn(jnp.einsum("oc,bcl->bol", p["W1"], x), p["bn1"]), 0.0)
    hp = jnp.pad(h, ((0, 0), (0, 0), (1, 1)))
    h2 = (jnp.einsum("oc,bcl->bol", p["W2"][:, :, 0], hp[:, :, :-2])
          + jnp.einsum("oc,bcl->bol", p["W2"][:, :, 1], hp[:, :, 1:-1])
          + jnp.einsum("oc,bcl->bol", p["W2"][:, :, 2], hp[:, :, 2:]))
    h2 = jnp.maximum(bn(h2, p["bn2"]), 0.0)
    h3 = jnp.maximum(bn(jnp.einsum("oc,bcl->bol", p["W3"], h2), p["bn3"]), 0.0)
    return h3


# --------------------------------------------------------------------------- #
if __name__ == "__main__":
    key = jax.random.PRNGKey(0)
    kx1, kx2, kp = jax.random.split(key, 3)

    inplanes, planes = 4, 4              # width = 4 (padded to 8), C3 = 64
    raw = make_params(kp, inplanes, planes)
    fp = fold_params(raw)
    C3 = planes * 16

    # --- case 1: small L -> slab path (single full-extent tile) -------------
    B1, L1 = 2, 16
    x1 = jax.random.normal(kx1, (B1, inplanes, L1), jnp.float32)
    out1 = jax.block_until_ready(bottleneck1_forward(x1, fp))
    assert out1.shape == (B1, C3, L1), out1.shape
    ref1 = reference_folded(x1, fp)
    assert jnp.allclose(out1, ref1, atol=2e-2, rtol=2e-2), \
        float(jnp.max(jnp.abs(out1 - ref1)))
    ref1o = reference_original(x1, raw)
    assert jnp.allclose(out1, ref1o, atol=2e-1, rtol=2e-1), \
        float(jnp.max(jnp.abs(out1 - ref1o)))

    # --- case 2: lane-dense L -> per-batch-row path (no wrapper transposes) --
    B2, L2 = 2, 128
    x2 = jax.random.normal(kx2, (B2, inplanes, L2), jnp.float32)
    out2 = jax.block_until_ready(bottleneck1_forward(x2, fp))
    assert out2.shape == (B2, C3, L2), out2.shape
    ref2 = reference_folded(x2, fp)
    assert jnp.allclose(out2, ref2, atol=2e-2, rtol=2e-2), \
        float(jnp.max(jnp.abs(out2 - ref2)))
    ref2o = reference_original(x2, raw)
    assert jnp.allclose(out2, ref2o, atol=2e-1, rtol=2e-1), \
        float(jnp.max(jnp.abs(out2 - ref2o)))

    print("KERNEL_OK")
</pallas_src>

<mosaic_0001>
module attributes {stable_mosaic.version = 11 : i64} {
  func.func @_bottleneck1_kernel(%arg0: i32, %arg1: memref<2x32xf32, #tpu.memory_space<vmem>>, %arg2: memref<4x32xbf16, #tpu.memory_space<vmem>>, %arg3: memref<8x4xbf16, #tpu.memory_space<vmem>>, %arg4: memref<8x1xf32, #tpu.memory_space<vmem>>, %arg5: memref<8x8xbf16, #tpu.memory_space<vmem>>, %arg6: memref<8x8xbf16, #tpu.memory_space<vmem>>, %arg7: memref<8x8xbf16, #tpu.memory_space<vmem>>, %arg8: memref<8x1xf32, #tpu.memory_space<vmem>>, %arg9: memref<64x8xbf16, #tpu.memory_space<vmem>>, %arg10: memref<64x1xf32, #tpu.memory_space<vmem>>, %arg11: memref<64x32xf32, #tpu.memory_space<vmem>>) attributes {dimension_semantics = [#tpu.dimension_semantics<parallel>], iteration_bounds = array<i64: 1>, scalar_prefetch = 0 : i64, scratch_operands = 0 : i64, tpu.core_type = #tpu.core_type<tc>, window_params = [{pipeline_mode = #tpu.pipeline_mode<synchronous>, transform_indices = @transform_0, window_bounds = array<i64: 2, 32>}, {transform_indices = @transform_1, window_bounds = array<i64: 4, 32>}, {pipeline_mode = #tpu.pipeline_mode<synchronous>, transform_indices = @transform_2, window_bounds = array<i64: 8, 4>}, {pipeline_mode = #tpu.pipeline_mode<synchronous>, transform_indices = @transform_3, window_bounds = array<i64: 8, 1>}, {pipeline_mode = #tpu.pipeline_mode<synchronous>, transform_indices = @transform_4, window_bounds = array<i64: 8, 8>}, {pipeline_mode = #tpu.pipeline_mode<synchronous>, transform_indices = @transform_5, window_bounds = array<i64: 8, 8>}, {pipeline_mode = #tpu.pipeline_mode<synchronous>, transform_indices = @transform_6, window_bounds = array<i64: 8, 8>}, {pipeline_mode = #tpu.pipeline_mode<synchronous>, transform_indices = @transform_7, window_bounds = array<i64: 8, 1>}, {pipeline_mode = #tpu.pipeline_mode<synchronous>, transform_indices = @transform_8, window_bounds = array<i64: 64, 8>}, {pipeline_mode = #tpu.pipeline_mode<synchronous>, transform_indices = @transform_9, window_bounds = array<i64: 64, 1>}, {transform_indices = @transform_10, window_bounds = array<i64: 64, 32>}]} {
    %c0 = arith.constant 0 : index
    %c0_0 = arith.constant 0 : index
    %0 = vector.load %arg2[%c0, %c0_0] : memref<4x32xbf16, #tpu.memory_space<vmem>>, vector<4x32xbf16>
    %c0_1 = arith.constant 0 : index
    %c0_2 = arith.constant 0 : index
    %1 = vector.load %arg3[%c0_1, %c0_2] : memref<8x4xbf16, #tpu.memory_space<vmem>>, vector<8x4xbf16>
    %cst = arith.constant dense<0.000000e+00> : vector<8x32xf32>
    %2 = tpu.matmul %1, %0, %cst {dimension_numbers = #tpu.dot_dimension_numbers<[1], [0], [0], [1], [0, 0, 1, 1], [], []>} : vector<8x4xbf16>, vector<4x32xbf16>, vector<8x32xf32> -> vector<8x32xf32>
    %c0_3 = arith.constant 0 : index
    %c0_4 = arith.constant 0 : index
    %3 = vector.load %arg4[%c0_3, %c0_4] : memref<8x1xf32, #tpu.memory_space<vmem>>, vector<8x1xf32>
    %4 = vector.broadcast %3 : vector<8x1xf32> to vector<8x32xf32>
    %5 = arith.addf %2, %4 : vector<8x32xf32>
    %cst_5 = arith.constant 0.000000e+00 : f32
    %6 = vector.broadcast %cst_5 : f32 to vector<8x32xf32>
    %7 = arith.maximumf %5, %6 : vector<8x32xf32>
    %8 = arith.truncf %7 : vector<8x32xf32> to vector<8x32xbf16>
    %cst_6 = arith.constant 0.000000e+00 : f32
    %9 = vector.broadcast %cst_6 : f32 to vector<8x1xf32>
    %10 = vector.extract_strided_slice %7 {offsets = [0, 0], sizes = [8, 31], strides = [1, 1]} : vector<8x32xf32> to vector<8x31xf32>
    %11 = tpu.concatenate %9, %10 in 1 : vector<8x1xf32>, vector<8x31xf32> -> vector<8x32xf32>
    %12 = vector.extract_strided_slice %7 {offsets = [0, 1], sizes = [8, 31], strides = [1, 1]} : vector<8x32xf32> to vector<8x31xf32>
    %13 = tpu.concatenate %12, %9 in 1 : vector<8x31xf32>, vector<8x1xf32> -> vector<8x32xf32>
    %c0_7 = arith.constant 0 : index
    %c0_8 = arith.constant 0 : index
    %14 = vector.load %arg1[%c0_7, %c0_8] : memref<2x32xf32, #tpu.memory_space<vmem>>, vector<1x32xf32>
    %15 = vector.broadcast %14 : vector<1x32xf32> to vector<8x32xf32>
    %16 = arith.mulf %11, %15 : vector<8x32xf32>
    %17 = arith.truncf %16 : vector<8x32xf32> to vector<8x32xbf16>
    %c1 = arith.constant 1 : index
    %c0_9 = arith.constant 0 : index
    %18 = vector.load %arg1[%c1, %c0_9] : memref<2x32xf32, #tpu.memory_space<vmem>>, vector<1x32xf32>
    %19 = vector.broadcast %18 : vector<1x32xf32> to vector<8x32xf32>
    %20 = arith.mulf %13, %19 : vector<8x32xf32>
    %21 = arith.truncf %20 : vector<8x32xf32> to vector<8x32xbf16>
    %c0_10 = arith.constant 0 : index
    %c0_11 = arith.constant 0 : index
    %22 = vector.load %arg5[%c0_10, %c0_11] : memref<8x8xbf16, #tpu.memory_space<vmem>>, vector<8x8xbf16>
    %cst_12 = arith.constant dense<0.000000e+00> : vector<8x32xf32>
    %23 = tpu.matmul %22, %17, %cst_12 {dimension_numbers = #tpu.dot_dimension_numbers<[1], [0], [0], [1], [0, 0, 1, 1], [], []>} : vector<8x8xbf16>, vector<8x32xbf16>, vector<8x32xf32> -> vector<8x32xf32>
    %c0_13 = arith.constant 0 : index
    %c0_14 = arith.constant 0 : index
    %24 = vector.load %arg6[%c0_13, %c0_14] : memref<8x8xbf16, #tpu.memory_space<vmem>>, vector<8x8xbf16>
    %cst_15 = arith.constant dense<0.000000e+00> : vector<8x32xf32>
    %25 = tpu.matmul %24, %8, %cst_15 {dimension_numbers = #tpu.dot_dimension_numbers<[1], [0], [0], [1], [0, 0, 1, 1], [], []>} : vector<8x8xbf16>, vector<8x32xbf16>, vector<8x32xf32> -> vector<8x32xf32>
    %26 = arith.addf %23, %25 : vector<8x32xf32>
    %c0_16 = arith.constant 0 : index
    %c0_17 = arith.constant 0 : index
    %27 = vector.load %arg7[%c0_16, %c0_17] : memref<8x8xbf16, #tpu.memory_space<vmem>>, vector<8x8xbf16>
    %cst_18 = arith.constant dense<0.000000e+00> : vector<8x32xf32>
    %28 = tpu.matmul %27, %21, %cst_18 {dimension_numbers = #tpu.dot_dimension_numbers<[1], [0], [0], [1], [0, 0, 1, 1], [], []>} : vector<8x8xbf16>, vector<8x32xbf16>, vector<8x32xf32> -> vector<8x32xf32>
    %29 = arith.addf %26, %28 : vector<8x32xf32>
    %c0_19 = arith.constant 0 : index
    %c0_20 = arith.constant 0 : index
    %30 = vector.load %arg8[%c0_19, %c0_20] : memref<8x1xf32, #tpu.memory_space<vmem>>, vector<8x1xf32>
    %31 = vector.broadcast %30 : vector<8x1xf32> to vector<8x32xf32>
    %32 = arith.addf %29, %31 : vector<8x32xf32>
    %cst_21 = arith.constant 0.000000e+00 : f32
    %33 = vector.broadcast %cst_21 : f32 to vector<8x32xf32>
    %34 = arith.maximumf %32, %33 : vector<8x32xf32>
    %c0_22 = arith.constant 0 : index
    %c0_23 = arith.constant 0 : index
    %35 = vector.load %arg9[%c0_22, %c0_23] : memref<64x8xbf16, #tpu.memory_space<vmem>>, vector<64x8xbf16>
    %36 = arith.truncf %34 : vector<8x32xf32> to vector<8x32xbf16>
    %cst_24 = arith.constant dense<0.000000e+00> : vector<64x32xf32>
    %37 = tpu.matmul %35, %36, %cst_24 {dimension_numbers = #tpu.dot_dimension_numbers<[1], [0], [0], [1], [0, 0, 1, 1], [], []>} : vector<64x8xbf16>, vector<8x32xbf16>, vector<64x32xf32> -> vector<64x32xf32>
    %c0_25 = arith.constant 0 : index
    %c0_26 = arith.constant 0 : index
    %38 = vector.load %arg10[%c0_25, %c0_26] : memref<64x1xf32, #tpu.memory_space<vmem>>, vector<64x1xf32>
    %39 = vector.broadcast %38 : vector<64x1xf32> to vector<64x32xf32>
    %40 = arith.addf %37, %39 : vector<64x32xf32>
    %cst_27 = arith.constant 0.000000e+00 : f32
    %41 = vector.broadcast %cst_27 : f32 to vector<64x32xf32>
    %42 = arith.maximumf %40, %41 : vector<64x32xf32>
    %c0_28 = arith.constant 0 : index
    %c0_29 = arith.constant 0 : index
    %43 = vector.load %arg11[%c0_28, %c0_29] : memref<64x32xf32, #tpu.memory_space<vmem>>, vector<64x32xf32>
    tpu.vector_store %arg11[%c0_28, %c0_29], %42 {strides = array<i32>} : memref<64x32xf32, #tpu.memory_space<vmem>>, vector<64x32xf32>,
    return
  }
  func.func @transform_0(%arg0: i32) -> (i32, i32) {
    %c0_i32 = arith.constant 0 : i32
    %c0_i32_0 = arith.constant 0 : i32
    %c0_i32_1 = arith.constant 0 : i32
    return %c0_i32, %c0_i32_0 : i32, i32
  }
  func.func @transform_1(%arg0: i32) -> (i32, i32) {
    %c0_i32 = arith.constant 0 : i32
    %c0_i32_0 = arith.constant 0 : i32
    return %c0_i32, %arg0 : i32, i32
  }
  func.func @transform_2(%arg0: i32) -> (i32, i32) {
    %c0_i32 = arith.constant 0 : i32
    %c0_i32_0 = arith.constant 0 : i32
    %c0_i32_1 = arith.constant 0 : i32
    return %c0_i32, %c0_i32_0 : i32, i32
  }
  func.func @transform_3(%arg0: i32) -> (i32, i32) {
    %c0_i32 = arith.constant 0 : i32
    %c0_i32_0 = arith.constant 0 : i32
    %c0_i32_1 = arith.constant 0 : i32
    return %c0_i32, %c0_i32_0 : i32, i32
  }
  func.func @transform_4(%arg0: i32) -> (i32, i32) {
    %c0_i32 = arith.constant 0 : i32
    %c0_i32_0 = arith.constant 0 : i32
    %c0_i32_1 = arith.constant 0 : i32
    return %c0_i32, %c0_i32_0 : i32, i32
  }
  func.func @transform_5(%arg0: i32) -> (i32, i32) {
    %c0_i32 = arith.constant 0 : i32
    %c0_i32_0 = arith.constant 0 : i32
    %c0_i32_1 = arith.constant 0 : i32
    return %c0_i32, %c0_i32_0 : i32, i32
  }
  func.func @transform_6(%arg0: i32) -> (i32, i32) {
    %c0_i32 = arith.constant 0 : i32
    %c0_i32_0 = arith.constant 0 : i32
    %c0_i32_1 = arith.constant 0 : i32
    return %c0_i32, %c0_i32_0 : i32, i32
  }
  func.func @transform_7(%arg0: i32) -> (i32, i32) {
    %c0_i32 = arith.constant 0 : i32
    %c0_i32_0 = arith.constant 0 : i32
    %c0_i32_1 = arith.constant 0 : i32
    return %c0_i32, %c0_i32_0 : i32, i32
  }
  func.func @transform_8(%arg0: i32) -> (i32, i32) {
    %c0_i32 = arith.constant 0 : i32
    %c0_i32_0 = arith.constant 0 : i32
    %c0_i32_1 = arith.constant 0 : i32
    return %c0_i32, %c0_i32_0 : i32, i32
  }
  func.func @transform_9(%arg0: i32) -> (i32, i32) {
    %c0_i32 = arith.constant 0 : i32
    %c0_i32_0 = arith.constant 0 : i32
    %c0_i32_1 = arith.constant 0 : i32
    return %c0_i32, %c0_i32_0 : i32, i32
  }
  func.func @transform_10(%arg0: i32) -> (i32, i32) {
    %c0_i32 = arith.constant 0 : i32
    %c0_i32_0 = arith.constant 0 : i32
    return %c0_i32, %arg0 : i32, i32
  }
}

</mosaic_0001>

<llo_original>
// kernel: bottleneck1_forward.1
$region0: #{bottleneck1_forward.1}
  #allocation0 [shape = 'u32[]', space=smem, size = 0x4, offset = 0x4, fixed_abs, tag = 'smem constant byte address 0x4 - core index']
  #allocation1 [shape = 'u32[144,128]{1,0:T(1,128)}', space=vmem, size = 0x12000, scoped, tag = 'internal scratch']
  %s0 = inlined_call_operand.vmem [shape: f32[2,32], index: 0, kind: input, shape index: {}]
  %s1 = inlined_call_operand.vmem [shape: bf16[4,32], index: 1, kind: input, shape index: {}]
  %s2 = inlined_call_operand.vmem [shape: bf16[8,4], index: 2, kind: input, shape index: {}]
  %s3 = inlined_call_operand.vmem [shape: f32[8,1], index: 3, kind: input, shape index: {}]
  %s4 = inlined_call_operand.vmem [shape: bf16[8,8], index: 4, kind: input, shape index: {}]
  %s5 = inlined_call_operand.vmem [shape: bf16[8,8], index: 5, kind: input, shape index: {}]
  %s6 = inlined_call_operand.vmem [shape: bf16[8,8], index: 6, kind: input, shape index: {}]
  %s7 = inlined_call_operand.vmem [shape: f32[8,1], index: 7, kind: input, shape index: {}]
  %s8 = inlined_call_operand.vmem [shape: bf16[64,8], index: 8, kind: input, shape index: {}]
  %s9 = inlined_call_operand.vmem [shape: f32[64,1], index: 9, kind: input, shape index: {}]
  %s10 = inlined_call_operand.vmem [shape: f32[64,32], index: 10, kind: output, shape index: {}]
  %s11 = sld [smem:[#allocation0]]
  $region50: #{bottleneck1_forward.1} parent=0
    _
  %s13 = ssub.s32 1, %s11
  %s14 = scalar_select 0, %s13, %s11
  // Predicated region
  $region2: #{bottleneck1_forward.1} parent=0 // pred_check
    _
  $region3: #{bottleneck1_forward.1} parent=0 // pred_check_branch
    %16 = sbr.rel (0) target = $region5
  $region4: #{bottleneck1_forward.1} parent=0 // pred_region
    _
  $region5: #{bottleneck1_forward.1} parent=0 // pred_fallthru
    _
  // Predicated region
  $region6: #{bottleneck1_forward.1} parent=0 // pred_check
    _
  $region7: #{bottleneck1_forward.1} parent=0 // pred_check_branch
    %18 = sbr.rel (0) target = $region9
  $region8: #{bottleneck1_forward.1} parent=0 // pred_region
    _
  $region9: #{bottleneck1_forward.1} parent=0 // pred_fallthru
    _
  // Predicated region
  $region10: #{bottleneck1_forward.1} parent=0 // pred_check
    _
  $region11: #{bottleneck1_forward.1} parent=0 // pred_check_branch
    %20 = sbr.rel (0) target = $region13
  $region12: #{bottleneck1_forward.1} parent=0 // pred_region
    _
  $region13: #{bottleneck1_forward.1} parent=0 // pred_fallthru
    _
  // Predicated region
  $region14: #{bottleneck1_forward.1} parent=0 // pred_check
    _
  $region15: #{bottleneck1_forward.1} parent=0 // pred_check_branch
    %22 = sbr.rel (0) target = $region17
  $region16: #{bottleneck1_forward.1} parent=0 // pred_region
    _
  $region17: #{bottleneck1_forward.1} parent=0 // pred_fallthru
    _
  // Predicated region
  $region18: #{bottleneck1_forward.1} parent=0 // pred_check
    _
  $region19: #{bottleneck1_forward.1} parent=0 // pred_check_branch
    %24 = sbr.rel (0) target = $region21
  $region20: #{bottleneck1_forward.1} parent=0 // pred_region
    _
  $region21: #{bottleneck1_forward.1} parent=0 // pred_fallthru
    _
  // Predicated region
  $region22: #{bottleneck1_forward.1} parent=0 // pred_check
    _
  $region23: #{bottleneck1_forward.1} parent=0 // pred_check_branch
    %26 = sbr.rel (0) target = $region25
  $region24: #{bottleneck1_forward.1} parent=0 // pred_region
    _
  $region25: #{bottleneck1_forward.1} parent=0 // pred_fallthru
    _
  // Predicated region
  $region26: #{bottleneck1_forward.1} parent=0 // pred_check
    _
  $region27: #{bottleneck1_forward.1} parent=0 // pred_check_branch
    %28 = sbr.rel (0) target = $region29
  $region28: #{bottleneck1_forward.1} parent=0 // pred_region
    _
  $region29: #{bottleneck1_forward.1} parent=0 // pred_fallthru
    _
  // Predicated region
  $region30: #{bottleneck1_forward.1} parent=0 // pred_check
    _
  $region31: #{bottleneck1_forward.1} parent=0 // pred_check_branch
    %30 = sbr.rel (0) target = $region33
  $region32: #{bottleneck1_forward.1} parent=0 // pred_region
    _
  $region33: #{bottleneck1_forward.1} parent=0 // pred_fallthru
    _
  // Predicated region
  $region34: #{bottleneck1_forward.1} parent=0 // pred_check
    _
  $region35: #{bottleneck1_forward.1} parent=0 // pred_check_branch
    %32 = sbr.rel (0) target = $region37
  $region36: #{bottleneck1_forward.1} parent=0 // pred_region
    _
  $region37: #{bottleneck1_forward.1} parent=0 // pred_fallthru
    _
  // Predicated region
  $region38: #{bottleneck1_forward.1} parent=0 // pred_check
    _
  $region39: #{bottleneck1_forward.1} parent=0 // pred_check_branch
    %34 = sbr.rel (0) target = $region41
  $region40: #{bottleneck1_forward.1} parent=0 // pred_region
    _
  $region41: #{bottleneck1_forward.1} parent=0 // pred_fallthru
    _
  %v36 = vld [vmem:[%s1] sm:$0x3]
  %v37 = vld [vmem:[%s2] sm:$0xf]
  %v38 = vld [vmem:[%s3] sm:$0xff]
  %40 = vset.pattern.permute.xlu0 0
  %41 = vperm.xlu0 %40, %v38
  %v42 = vpop.permute.xlu0 %41
  %vm44 = vcmask 31744
  %v46 = vsel %vm44, %v37, 0
  %vm48 = vcmask 1041408
  %v50 = vsel %vm48, %v36, 0
  %52 = vmatprep.subr.bf16.mxu0 0
  %53 = vmatpush1.bf16.msra.mxu0 %v50
  %54 = vmatprep.subr.bf16.mxu0 0
  %55 = vmatpush1.bf16.msra.mxu0 0
  %56 = vmatprep.subr.bf16.mxu0 0
  %57 = vmatpush1.bf16.msra.mxu0 0
  %58 = vmatprep.subr.bf16.mxu0 0
  %59 = vmatpush1.bf16.msra.mxu0 0
  %60 = vmatprep.subr.bf16.mxu0 0
  %61 = vmatpush1.bf16.msra.mxu0 0
  %62 = vmatprep.subr.bf16.mxu0 0
  %63 = vmatpush1.bf16.msra.mxu0 0
  %64 = vmatprep.subr.bf16.mxu0 0
  %65 = vmatpush1.bf16.msra.mxu0 0
  %66 = vmatprep.subr.bf16.mxu0 0
  %67 = vmatpush1.bf16.msra.mxu0 0
  %68 = vmatprep.subr.bf16.mxu0 0
  %69 = vmatpush1.bf16.msra.mxu0 0
  %70 = vmatprep.subr.bf16.mxu0 0
  %71 = vmatpush1.bf16.msra.mxu0 0
  %72 = vmatprep.subr.bf16.mxu0 0
  %73 = vmatpush1.bf16.msra.mxu0 0
  %74 = vmatprep.subr.bf16.mxu0 0
  %75 = vmatpush1.bf16.msra.mxu0 0
  %76 = vmatprep.subr.bf16.mxu0 0
  %77 = vmatpush1.bf16.msra.mxu0 0
  %78 = vmatprep.subr.bf16.mxu0 0
  %79 = vmatpush1.bf16.msra.mxu0 0
  %80 = vmatprep.subr.bf16.mxu0 0
  %81 = vmatpush1.bf16.msra.mxu0 0
  %82 = vmatprep.subr.bf16.mxu0 0
  %83 = vmatpush1.bf16.msra.mxu0 0
  %84 = vmatprep.mubr.bf16.mxu0 0
  %85 = vmatmul.mubr.bf16.gmra.mrb[0].mxu0 %v46
  %v86 = vpop.f32.mrb[0].mxu0
  %v87 = vadd.f32 %v42, %v86
  %v88 = vpop.f32.mrb[0].mxu0
  %v89 = vpop.f32.mrb[0].mxu0
  %v90 = vpop.f32.mrb[0].mxu0
  %91 = vdwg.mxu0
  %v92 = vmax.f32 %v87, 0.0
  %v93 = vpack.c.bf16 %v92, %v92
  %95 = vrot.lane.b32.xlu0 %v92, 1
  %v96 = vpop.permute.xlu0 %95
  %vm98 = vcmask 7168
  %v99 = vsel %vm98, 0.0, %v96
  %100 = vrot.lane.b32.xlu0 %v92, 127
  %v101 = vpop.permute.xlu0 %100
  %vm103 = vcmask 252928
  %v104 = vsel %vm103, %v101, 0.0
  %v105 = vld [vmem:[%s0] sm:$0x1]
  %v106 = vlaneseq
  %v107 = vshrl.u32 %v106, 7
  %v108 = vsub.s32 0, %v107
  %v109 = vrot.slane %v105, %v108
  %v110 = vmul.f32 %v99, %v109
  %v111 = vpack.c.bf16 %v110, %v110
  %v112 = vld [vmem:[%s0 + $0x1] sm:$0x1]
  %v113 = vlaneseq
  %v114 = vshrl.u32 %v113, 7
  %v115 = vsub.s32 0, %v114
  %v116 = vrot.slane %v112, %v115
  %v117 = vmul.f32 %v104, %v116
  %v118 = vpack.c.bf16 %v117, %v117
  %v119 = vld [vmem:[%s4] sm:$0xf]
  %v120 = vld [vmem:[%s5] sm:$0xf]
  %vm121 = vcmask 64512
  %v123 = vsel %vm121, %v120, 0
  %vm125 = vcmask 1043456
  %v127 = vsel %vm125, %v93, 0
  %129 = vmatprep.subr.bf16.mxu0 0
  %130 = vmatpush1.bf16.msra.mxu0 %v127
  %131 = vmatprep.subr.bf16.mxu0 0
  %132 = vmatpush1.bf16.msra.mxu0 0
  %133 = vmatprep.subr.bf16.mxu0 0
  %134 = vmatpush1.bf16.msra.mxu0 0
  %135 = vmatprep.subr.bf16.mxu0 0
  %136 = vmatpush1.bf16.msra.mxu0 0
  %137 = vmatprep.subr.bf16.mxu0 0
  %138 = vmatpush1.bf16.msra.mxu0 0
  %139 = vmatprep.subr.bf16.mxu0 0
  %140 = vmatpush1.bf16.msra.mxu0 0
  %141 = vmatprep.subr.bf16.mxu0 0
  %142 = vmatpush1.bf16.msra.mxu0 0
  %143 = vmatprep.subr.bf16.mxu0 0
  %144 = vmatpush1.bf16.msra.mxu0 0
  %145 = vmatprep.subr.bf16.mxu0 0
  %146 = vmatpush1.bf16.msra.mxu0 0
  %147 = vmatprep.subr.bf16.mxu0 0
  %148 = vmatpush1.bf16.msra.mxu0 0
  %149 = vmatprep.subr.bf16.mxu0 0
  %150 = vmatpush1.bf16.msra.mxu0 0
  %151 = vmatprep.subr.bf16.mxu0 0
  %152 = vmatpush1.bf16.msra.mxu0 0
  %153 = vmatprep.subr.bf16.mxu0 0
  %154 = vmatpush1.bf16.msra.mxu0 0
  %155 = vmatprep.subr.bf16.mxu0 0
  %156 = vmatpush1.bf16.msra.mxu0 0
  %157 = vmatprep.subr.bf16.mxu0 0
  %158 = vmatpush1.bf16.msra.mxu0 0
  %159 = vmatprep.subr.bf16.mxu0 0
  %160 = vmatpush1.bf16.msra.mxu0 0
  %161 = vmatprep.mubr.bf16.mxu0 0
  %162 = vmatmul.mubr.bf16.gmra.mrb[0].mxu0 %v123
  %v163 = vpop.f32.mrb[0].mxu0
  %v164 = vadd.f32 0.0, %v163
  %v165 = vpop.f32.mrb[0].mxu0
  %v166 = vpop.f32.mrb[0].mxu0
  %v167 = vpop.f32.mrb[0].mxu0
  %168 = vdwg.mxu0
  %v170 = vsel %vm121, %v119, 0
  %v173 = vsel %vm125, %v111, 0
  %175 = vmatprep.subr.bf16.mxu0 0
  %176 = vmatpush1.bf16.msra.mxu0 %v173
  %177 = vmatprep.subr.bf16.mxu0 0
  %178 = vmatpush1.bf16.msra.mxu0 0
  %179 = vmatprep.subr.bf16.mxu0 0
  %180 = vmatpush1.bf16.msra.mxu0 0
  %181 = vmatprep.subr.bf16.mxu0 0
  %182 = vmatpush1.bf16.msra.mxu0 0
  %183 = vmatprep.subr.bf16.mxu0 0
  %184 = vmatpush1.bf16.msra.mxu0 0
  %185 = vmatprep.subr.bf16.mxu0 0
  %186 = vmatpush1.bf16.msra.mxu0 0
  %187 = vmatprep.subr.bf16.mxu0 0
  %188 = vmatpush1.bf16.msra.mxu0 0
  %189 = vmatprep.subr.bf16.mxu0 0
  %190 = vmatpush1.bf16.msra.mxu0 0
  %191 = vmatprep.subr.bf16.mxu0 0
  %192 = vmatpush1.bf16.msra.mxu0 0
  %193 = vmatprep.subr.bf16.mxu0 0
  %194 = vmatpush1.bf16.msra.mxu0 0
  %195 = vmatprep.subr.bf16.mxu0 0
  %196 = vmatpush1.bf16.msra.mxu0 0
  %197 = vmatprep.subr.bf16.mxu0 0
  %198 = vmatpush1.bf16.msra.mxu0 0
  %199 = vmatprep.subr.bf16.mxu0 0
  %200 = vmatpush1.bf16.msra.mxu0 0
  %201 = vmatprep.subr.bf16.mxu0 0
  %202 = vmatpush1.bf16.msra.mxu0 0
  %203 = vmatprep.subr.bf16.mxu0 0
  %204 = vmatpush1.bf16.msra.mxu0 0
  %205 = vmatprep.subr.bf16.mxu0 0
  %206 = vmatpush1.bf16.msra.mxu0 0
  %207 = vmatprep.mubr.bf16.mxu0 0
  %208 = vmatmul.mubr.bf16.gmra.mrb[0].mxu0 %v170
  %v209 = vpop.f32.mrb[0].mxu0
  %v210 = vadd.f32 %v164, %v209
  %v211 = vpop.f32.mrb[0].mxu0
  %v212 = vpop.f32.mrb[0].mxu0
  %v213 = vpop.f32.mrb[0].mxu0
  %214 = vdwg.mxu0
  %v215 = vld [vmem:[%s6] sm:$0xf]
  %v217 = vsel %vm121, %v215, 0
  %v220 = vsel %vm125, %v118, 0
  %222 = vmatprep.subr.bf16.mxu0 0
  %223 = vmatpush1.bf16.msra.mxu0 %v220
  %224 = vmatprep.subr.bf16.mxu0 0
  %225 = vmatpush1.bf16.msra.mxu0 0
  %226 = vmatprep.subr.bf16.mxu0 0
  %227 = vmatpush1.bf16.msra.mxu0 0
  %228 = vmatprep.subr.bf16.mxu0 0
  %229 = vmatpush1.bf16.msra.mxu0 0
  %230 = vmatprep.subr.bf16.mxu0 0
  %231 = vmatpush1.bf16.msra.mxu0 0
  %232 = vmatprep.subr.bf16.mxu0 0
  %233 = vmatpush1.bf16.msra.mxu0 0
  %234 = vmatprep.subr.bf16.mxu0 0
  %235 = vmatpush1.bf16.msra.mxu0 0
  %236 = vmatprep.subr.bf16.mxu0 0
  %237 = vmatpush1.bf16.msra.mxu0 0
  %238 = vmatprep.subr.bf16.mxu0 0
  %239 = vmatpush1.bf16.msra.mxu0 0
  %240 = vmatprep.subr.bf16.mxu0 0
  %241 = vmatpush1.bf16.msra.mxu0 0
  %242 = vmatprep.subr.bf16.mxu0 0
  %243 = vmatpush1.bf16.msra.mxu0 0
  %244 = vmatprep.subr.bf16.mxu0 0
  %245 = vmatpush1.bf16.msra.mxu0 0
  %246 = vmatprep.subr.bf16.mxu0 0
  %247 = vmatpush1.bf16.msra.mxu0 0
  %248 = vmatprep.subr.bf16.mxu0 0
  %249 = vmatpush1.bf16.msra.mxu0 0
  %250 = vmatprep.subr.bf16.mxu0 0
  %251 = vmatpush1.bf16.msra.mxu0 0
  %252 = vmatprep.subr.bf16.mxu0 0
  %253 = vmatpush1.bf16.msra.mxu0 0
  %254 = vmatprep.mubr.bf16.mxu0 0
  %255 = vmatmul.mubr.bf16.gmra.mrb[0].mxu0 %v217
  %v256 = vpop.f32.mrb[0].mxu0
  %v257 = vadd.f32 0.0, %v256
  %v258 = vpop.f32.mrb[0].mxu0
  %v259 = vpop.f32.mrb[0].mxu0
  %v260 = vpop.f32.mrb[0].mxu0
  %261 = vdwg.mxu0
  %v262 = vadd.f32 %v210, %v257
  %v263 = vld [vmem:[%s7] sm:$0xff]
  %265 = vset.pattern.permute.xlu0 0
  %266 = vperm.xlu0 %265, %v263
  %v267 = vpop.permute.xlu0 %266
  %v269 = vadd.f32 %v262, %v267
  %v270 = vmax.f32 %v269, 0.0
  %v271 = vld [vmem:[%s8] sm:$0xf]
  %v272 = vld [vmem:[%s8 + $0x4] sm:$0xf]
  %v273 = vld [vmem:[%s8 + $0x8] sm:$0xf]
  %v274 = vld [vmem:[%s8 + $0xc] sm:$0xf]
  %v275 = vld [vmem:[%s8 + $0x10] sm:$0xf]
  %v276 = vld [vmem:[%s8 + $0x14] sm:$0xf]
  %v277 = vld [vmem:[%s8 + $0x18] sm:$0xf]
  %v278 = vld [vmem:[%s8 + $0x1c] sm:$0xf]
  %v279 = vpack.c.bf16 %v270, %v270
  %v280 = vld [vmem:[%s9] sm:$0xff]
  %v281 = vld [vmem:[%s9 + $0x8] sm:$0xff]
  %v282 = vld [vmem:[%s9 + $0x10] sm:$0xff]
  %v283 = vld [vmem:[%s9 + $0x18] sm:$0xff]
  %v284 = vld [vmem:[%s9 + $0x20] sm:$0xff]
  %v285 = vld [vmem:[%s9 + $0x28] sm:$0xff]
  %v286 = vld [vmem:[%s9 + $0x30] sm:$0xff]
  %v287 = vld [vmem:[%s9 + $0x38] sm:$0xff]
  %289 = vset.pattern.permute.xlu0 0
  %290 = vperm.xlu0 %289, %v280
  %v291 = vpop.permute.xlu0 %290
  %294 = vset.pattern.permute.xlu0 0
  %295 = vperm.xlu0 %294, %v281
  %v296 = vpop.permute.xlu0 %295
  %299 = vset.pattern.permute.xlu0 0
  %300 = vperm.xlu0 %299, %v282
  %v301 = vpop.permute.xlu0 %300
  %304 = vset.pattern.permute.xlu0 0
  %305 = vperm.xlu0 %304, %v283
  %v306 = vpop.permute.xlu0 %305
  %309 = vset.pattern.permute.xlu0 0
  %310 = vperm.xlu0 %309, %v284
  %v311 = vpop.permute.xlu0 %310
  %314 = vset.pattern.permute.xlu0 0
  %315 = vperm.xlu0 %314, %v285
  %v316 = vpop.permute.xlu0 %315
  %319 = vset.pattern.permute.xlu0 0
  %320 = vperm.xlu0 %319, %v286
  %v321 = vpop.permute.xlu0 %320
  %324 = vset.pattern.permute.xlu0 0
  %325 = vperm.xlu0 %324, %v287
  %v326 = vpop.permute.xlu0 %325
  %v336 = vunpack.c.l.b16 %v271
  %v337 = vunpack.c.l.b16 %v272
  %v338 = vunpack.c.l.b16 %v273
  %v339 = vunpack.c.l.b16 %v274
  %v340 = vunpack.c.l.b16 %v275
  %v341 = vunpack.c.l.b16 %v276
  %v342 = vunpack.c.l.b16 %v277
  %v343 = vunpack.c.l.b16 %v278
  %v344 = vpack.c.b16 %v337, %v336
  %v345 = vpack.c.b16 %v339, %v338
  %v346 = vpack.c.b16 %v341, %v340
  %v347 = vpack.c.b16 %v343, %v342
  %v349 = vsel %vm121, %v344, 0
  %v352 = vsel %vm121, %v345, 0
  %v355 = vsel %vm121, %v346, 0
  %v358 = vsel %vm121, %v347, 0
  %v361 = vsel %vm125, %v279, 0
  %363 = vmatprep.subr.bf16.mxu0 0
  %364 = vmatpush1.bf16.msra.mxu0 %v361
  %365 = vmatprep.subr.bf16.mxu0 0
  %366 = vmatpush1.bf16.msra.mxu0 0
  %367 = vmatprep.subr.bf16.mxu0 0
  %368 = vmatpush1.bf16.msra.mxu0 0
  %369 = vmatprep.subr.bf16.mxu0 0
  %370 = vmatpush1.bf16.msra.mxu0 0
  %371 = vmatprep.subr.bf16.mxu0 0
  %372 = vmatpush1.bf16.msra.mxu0 0
  %373 = vmatprep.subr.bf16.mxu0 0
  %374 = vmatpush1.bf16.msra.mxu0 0
  %375 = vmatprep.subr.bf16.mxu0 0
  %376 = vmatpush1.bf16.msra.mxu0 0
  %377 = vmatprep.subr.bf16.mxu0 0
  %378 = vmatpush1.bf16.msra.mxu0 0
  %379 = vmatprep.subr.bf16.mxu0 0
  %380 = vmatpush1.bf16.msra.mxu0 0
  %381 = vmatprep.subr.bf16.mxu0 0
  %382 = vmatpush1.bf16.msra.mxu0 0
  %383 = vmatprep.subr.bf16.mxu0 0
  %384 = vmatpush1.bf16.msra.mxu0 0
  %385 = vmatprep.subr.bf16.mxu0 0
  %386 = vmatpush1.bf16.msra.mxu0 0
  %387 = vmatprep.subr.bf16.mxu0 0
  %388 = vmatpush1.bf16.msra.mxu0 0
  %389 = vmatprep.subr.bf16.mxu0 0
  %390 = vmatpush1.bf16.msra.mxu0 0
  %391 = vmatprep.subr.bf16.mxu0 0
  %392 = vmatpush1.bf16.msra.mxu0 0
  %393 = vmatprep.subr.bf16.mxu0 0
  %394 = vmatpush1.bf16.msra.mxu0 0
  %395 = vmatprep.mubr.bf16.mxu0 0
  %396 = vmatmul.mubr.bf16.gmra.mrb[0].mxu0 %v349
  %v397 = vpop.f32.mrb[0].mxu0
  %v398 = vadd.f32 %v291, %v397
  %v399 = vpop.f32.mrb[0].mxu0
  %v400 = vpop.f32.mrb[0].mxu0
  %v401 = vadd.f32 %v296, %v400
  %v402 = vpop.f32.mrb[0].mxu0
  %403 = vmatprep.mubr.bf16.mxu0 0
  %404 = vmatmul.mubr.bf16.gmra.mrb[0].mxu0 %v352
  %v405 = vpop.f32.mrb[0].mxu0
  %v406 = vadd.f32 %v301, %v405
  %v407 = vpop.f32.mrb[0].mxu0
  %v408 = vpop.f32.mrb[0].mxu0
  %v409 = vadd.f32 %v306, %v408
  %v410 = vpop.f32.mrb[0].mxu0
  %411 = vmatprep.mubr.bf16.mxu0 0
  %412 = vmatmul.mubr.bf16.gmra.mrb[0].mxu0 %v355
  %v413 = vpop.f32.mrb[0].mxu0
  %v414 = vadd.f32 %v311, %v413
  %v415 = vpop.f32.mrb[0].mxu0
  %v416 = vpop.f32.mrb[0].mxu0
  %v417 = vadd.f32 %v316, %v416
  %v418 = vpop.f32.mrb[0].mxu0
  %419 = vmatprep.mubr.bf16.mxu0 0
  %420 = vmatmul.mubr.bf16.gmra.mrb[0].mxu0 %v358
  %v421 = vpop.f32.mrb[0].mxu0
  %v422 = vadd.f32 %v321, %v421
  %v423 = vpop.f32.mrb[0].mxu0
  %v424 = vpop.f32.mrb[0].mxu0
  %v425 = vadd.f32 %v326, %v424
  %v426 = vpop.f32.mrb[0].mxu0
  %427 = vdwg.mxu0
  %v428 = vmax.f32 %v398, 0.0
  %v429 = vmax.f32 %v401, 0.0
  %v430 = vmax.f32 %v406, 0.0
  %v431 = vmax.f32 %v409, 0.0
  %v432 = vmax.f32 %v414, 0.0
  %v433 = vmax.f32 %v417, 0.0
  %v434 = vmax.f32 %v422, 0.0
  %v435 = vmax.f32 %v425, 0.0
  %vm436 = vcmask 261120
  %437 = vst.msk [vmem:[%s10] sm:$0xff] %vm436, %v428
  %438 = vst.msk [vmem:[%s10 + $0x8] sm:$0xff] %vm436, %v429
  %439 = vst.msk [vmem:[%s10 + $0x10] sm:$0xff] %vm436, %v430
  %440 = vst.msk [vmem:[%s10 + $0x18] sm:$0xff] %vm436, %v431
  %441 = vst.msk [vmem:[%s10 + $0x20] sm:$0xff] %vm436, %v432
  %442 = vst.msk [vmem:[%s10 + $0x28] sm:$0xff] %vm436, %v433
  %443 = vst.msk [vmem:[%s10 + $0x30] sm:$0xff] %vm436, %v434
  %444 = vst.msk [vmem:[%s10 + $0x38] sm:$0xff] %vm436, %v435
  // Predicated region
  $region42: #{bottleneck1_forward.1} parent=0 // pred_check
    _
  $region43: #{bottleneck1_forward.1} parent=0 // pred_check_branch
    %446 = sbr.rel (0) target = $region45
  $region44: #{bottleneck1_forward.1} parent=0 // pred_region
    _
  $region45: #{bottleneck1_forward.1} parent=0 // pred_fallthru
    _
  // Predicated region
  $region46: #{bottleneck1_forward.1} parent=0 // pred_check
    _
  $region47: #{bottleneck1_forward.1} parent=0 // pred_check_branch
    %448 = sbr.rel (0) target = $region49
  $region48: #{bottleneck1_forward.1} parent=0 // pred_region
    _
  $region49: #{bottleneck1_forward.1} parent=0 // pred_fallthru
    _

</llo_original>
